<compile_context>
chip_gen: v7x
topology: tpu7x:2x2x1
jax: 0.10.0
libtpu: 0.0.40
codegen_flags: <defaults>
</compile_context>

<pallas_src>
import numpy as np
import jax
import jax.numpy as jnp
from jax import lax
from jax.experimental import pallas as pl
from jax.experimental.pallas import tpu as pltpu


# ----------------------------------------------------------------------------
# Parameter setup (host-side glue): PyTorch-compatible bicubic matrices.
# ----------------------------------------------------------------------------
def _cubic_kernel(x, a=-0.75):
    x = np.abs(x)
    poly1 = ((a + 2.0) * x - (a + 3.0)) * x * x + 1.0          # |x| <= 1
    poly2 = a * ((((x - 5.0) * x) + 8.0) * x - 4.0)            # 1 < |x| < 2
    return np.where(x <= 1.0, poly1, np.where(x < 2.0, poly2, 0.0))


def bicubic_resize_matrix(out_size, in_size):
    """[out_size, in_size] matrix s.t. y = M @ x is a 1-D bicubic resize
    (align_corners=False, border-clamped, a=-0.75), matching torch bicubic."""
    scale = in_size / out_size
    i = np.arange(out_size, dtype=np.float64)
    src = (i + 0.5) * scale - 0.5
    i0 = np.floor(src).astype(np.int64)
    t = src - i0
    M = np.zeros((out_size, in_size), dtype=np.float64)
    for k in (-1, 0, 1, 2):
        idx = np.clip(i0 + k, 0, in_size - 1)
        w = _cubic_kernel(t - k)
        np.add.at(M, (np.arange(out_size), idx), w)
    return M.astype(np.float32)


def _round_up(x, n):
    return ((x + n - 1) // n) * n


def _crop_matrices(H, W, min_size, key):
    """Crop-folded f32 interpolation matrices: A_h_crop [m, H], A_w_crop [m, W]."""
    scale = min_size / float(min(H, W))
    new_h = int(round(H * scale))
    new_w = int(round(W * scale))
    a_h = jnp.asarray(bicubic_resize_matrix(new_h, H))   # [new_h, H]
    a_w = jnp.asarray(bicubic_resize_matrix(new_w, W))   # [new_w, W]
    # RandomCrop((min_size, min_size)) — uniform top/left offsets.
    k1, k2 = jax.random.split(key)
    top = jax.random.randint(k1, (), 0, new_h - min_size + 1)
    left = jax.random.randint(k2, (), 0, new_w - min_size + 1)
    a_h_c = lax.dynamic_slice(a_h, (top, 0), (min_size, H))    # [m, H]
    a_w_c = lax.dynamic_slice(a_w, (left, 0), (min_size, W))   # [m, W]
    return a_h_c, a_w_c


# ----------------------------------------------------------------------------
# Pallas kernel: per-image, channel-batched  A_h @ X[c] then folded (.) @ A_w^T
# ----------------------------------------------------------------------------
def _resize_crop_kernel(x_ref, ah_ref, awt_ref, o_ref):
    # x_ref:   [1, C, H, W]      bf16
    # ah_ref:  [m, H]            bf16  (crop rows already sliced)
    # awt_ref: [W, m_pad]        bf16  (crop rows sliced, pre-transposed, lane-padded)
    # o_ref:   [1, C, m, m_pad]  input dtype
    C = x_ref.shape[1]
    m = ah_ref.shape[0]
    m_pad = awt_ref.shape[1]

    ah = ah_ref[...]
    awt = awt_ref[...]

    # First (H) contraction per channel: [m, H] @ [H, W] -> [m, W], f32 acc.
    tmps = [
        jnp.dot(ah, x_ref[0, c], preferred_element_type=jnp.float32)
        for c in range(C)
    ]
    tmp = jnp.concatenate(tmps, axis=0).astype(awt.dtype)          # [C*m, W]

    # Second (W) contraction folded over channels: [C*m, W] @ [W, m_pad].
    out = jnp.dot(tmp, awt, preferred_element_type=jnp.float32)    # [C*m, m_pad]
    o_ref[0] = out.reshape(C, m, m_pad).astype(o_ref.dtype)


def resize_crop_min_size(img, min_size, key):
    """JAX/Pallas equivalent of ResizeCropMinSize.forward for NCHW tensors."""
    N, C, H, W = img.shape
    scale = min_size / float(min(H, W))
    if scale == 1.0:
        return img                                   # identity path (consistent return type)

    m = min_size
    m_pad = _round_up(m, 128)                        # lane-dense output stores

    a_h_c, a_w_c = _crop_matrices(H, W, min_size, key)

    # Pre-transpose A_w once in XLA, zero-pad its lane dim, cast MXU inputs to bf16.
    a_w_t = jnp.zeros((W, m_pad), jnp.float32).at[:, :m].set(a_w_c.T)
    ah_bf = a_h_c.astype(jnp.bfloat16)
    awt_bf = a_w_t.astype(jnp.bfloat16)
    img_bf = img.astype(jnp.bfloat16)

    out_dtype = img.dtype
    out_itemsize = jnp.dtype(out_dtype).itemsize
    # Explicit scoped-VMEM budget (v5e default is 16 MiB; keep under v7x's 64 MiB).
    est = (2 * (C * H * W * 2)                       # double-buffered bf16 img blocks
           + 2 * (m * H * 2 + W * m_pad * 2)         # interpolation matrices
           + 2 * (C * m * m_pad * out_itemsize))     # output blocks
    vmem_limit = int(min(max(4 * est, 32 * 1024 * 1024), 64 * 1024 * 1024))

    out = pl.pallas_call(
        _resize_crop_kernel,
        out_shape=jax.ShapeDtypeStruct((N, C, m, m_pad), out_dtype),
        grid=(N,),
        in_specs=[
            pl.BlockSpec((1, C, H, W), lambda n: (n, 0, 0, 0)),
            pl.BlockSpec((m, H), lambda n: (0, 0)),       # constant index_map -> fetched once
            pl.BlockSpec((W, m_pad), lambda n: (0, 0)),   # constant index_map -> fetched once
        ],
        out_specs=pl.BlockSpec((1, C, m, m_pad), lambda n: (n, 0, 0, 0)),
        compiler_params=pltpu.CompilerParams(
            dimension_semantics=("parallel",),            # megacore split over images (v7x)
            vmem_limit_bytes=vmem_limit),
    )(img_bf, ah_bf, awt_bf)

    return out[..., :m]                                   # drop lane padding


if __name__ == "__main__":
    key = jax.random.PRNGKey(0)
    k_img, k_crop = jax.random.split(key)

    # Small NCHW input; min(H, W)=16 > min_size=8 so the resize+crop path runs.
    N, C, H, W = 2, 4, 16, 20
    min_size = 8
    img = jax.random.normal(k_img, (N, C, H, W), dtype=jnp.float32)

    out = resize_crop_min_size(img, min_size, k_crop)
    out = jax.block_until_ready(out)
    assert out.shape == (N, C, min_size, min_size)

    # Pure-JAX f32 reference of the same math (same key -> same crop offsets).
    a_h_c, a_w_c = _crop_matrices(H, W, min_size, k_crop)
    ref = jnp.einsum("mh,nchw,kw->ncmk", a_h_c, img, a_w_c)
    # bf16 inputs with f32 accumulation -> loosened tolerance vs the f32 reference.
    np.testing.assert_allclose(np.asarray(out), np.asarray(ref), rtol=5e-2, atol=5e-2)

    print("KERNEL_OK")
</pallas_src>

<mosaic_0001>
module attributes {stable_mosaic.version = 11 : i64} {
  func.func @_resize_crop_kernel(%arg0: i32, %arg1: memref<1x4x16x20xbf16, #tpu.memory_space<vmem>>, %arg2: memref<8x16xbf16, #tpu.memory_space<vmem>>, %arg3: memref<20x128xbf16, #tpu.memory_space<vmem>>, %arg4: memref<1x4x8x128xf32, #tpu.memory_space<vmem>>) attributes {dimension_semantics = [#tpu.dimension_semantics<parallel>], iteration_bounds = array<i64: 2>, scalar_prefetch = 0 : i64, scratch_operands = 0 : i64, tpu.core_type = #tpu.core_type<tc>, window_params = [{transform_indices = @transform_0, window_bounds = array<i64: 1, 4, 16, 20>}, {pipeline_mode = #tpu.pipeline_mode<synchronous>, transform_indices = @transform_1, window_bounds = array<i64: 8, 16>}, {pipeline_mode = #tpu.pipeline_mode<synchronous>, transform_indices = @transform_2, window_bounds = array<i64: 20, 128>}, {transform_indices = @transform_3, window_bounds = array<i64: 1, 4, 8, 128>}]} {
    %c0 = arith.constant 0 : index
    %c0_0 = arith.constant 0 : index
    %0 = vector.load %arg2[%c0, %c0_0] : memref<8x16xbf16, #tpu.memory_space<vmem>>, vector<8x16xbf16>
    %c0_1 = arith.constant 0 : index
    %c0_2 = arith.constant 0 : index
    %1 = vector.load %arg3[%c0_1, %c0_2] : memref<20x128xbf16, #tpu.memory_space<vmem>>, vector<20x128xbf16>
    %c0_3 = arith.constant 0 : index
    %c0_4 = arith.constant 0 : index
    %c0_5 = arith.constant 0 : index
    %c0_6 = arith.constant 0 : index
    %2 = vector.load %arg1[%c0_3, %c0_4, %c0_5, %c0_6] : memref<1x4x16x20xbf16, #tpu.memory_space<vmem>>, vector<1x1x16x20xbf16>
    %3 = vector.shape_cast %2 : vector<1x1x16x20xbf16> to vector<16x20xbf16>
    %cst = arith.constant dense<0.000000e+00> : vector<8x20xf32>
    %4 = tpu.matmul %0, %3, %cst {dimension_numbers = #tpu.dot_dimension_numbers<[1], [0], [0], [1], [0, 0, 1, 1], [], []>} : vector<8x16xbf16>, vector<16x20xbf16>, vector<8x20xf32> -> vector<8x20xf32>
    %c0_7 = arith.constant 0 : index
    %c1 = arith.constant 1 : index
    %c0_8 = arith.constant 0 : index
    %c0_9 = arith.constant 0 : index
    %5 = vector.load %arg1[%c0_7, %c1, %c0_8, %c0_9] : memref<1x4x16x20xbf16, #tpu.memory_space<vmem>>, vector<1x1x16x20xbf16>
    %6 = vector.shape_cast %5 : vector<1x1x16x20xbf16> to vector<16x20xbf16>
    %cst_10 = arith.constant dense<0.000000e+00> : vector<8x20xf32>
    %7 = tpu.matmul %0, %6, %cst_10 {dimension_numbers = #tpu.dot_dimension_numbers<[1], [0], [0], [1], [0, 0, 1, 1], [], []>} : vector<8x16xbf16>, vector<16x20xbf16>, vector<8x20xf32> -> vector<8x20xf32>
    %c0_11 = arith.constant 0 : index
    %c2 = arith.constant 2 : index
    %c0_12 = arith.constant 0 : index
    %c0_13 = arith.constant 0 : index
    %8 = vector.load %arg1[%c0_11, %c2, %c0_12, %c0_13] : memref<1x4x16x20xbf16, #tpu.memory_space<vmem>>, vector<1x1x16x20xbf16>
    %9 = vector.shape_cast %8 : vector<1x1x16x20xbf16> to vector<16x20xbf16>
    %cst_14 = arith.constant dense<0.000000e+00> : vector<8x20xf32>
    %10 = tpu.matmul %0, %9, %cst_14 {dimension_numbers = #tpu.dot_dimension_numbers<[1], [0], [0], [1], [0, 0, 1, 1], [], []>} : vector<8x16xbf16>, vector<16x20xbf16>, vector<8x20xf32> -> vector<8x20xf32>
    %c0_15 = arith.constant 0 : index
    %c3 = arith.constant 3 : index
    %c0_16 = arith.constant 0 : index
    %c0_17 = arith.constant 0 : index
    %11 = vector.load %arg1[%c0_15, %c3, %c0_16, %c0_17] : memref<1x4x16x20xbf16, #tpu.memory_space<vmem>>, vector<1x1x16x20xbf16>
    %12 = vector.shape_cast %11 : vector<1x1x16x20xbf16> to vector<16x20xbf16>
    %cst_18 = arith.constant dense<0.000000e+00> : vector<8x20xf32>
    %13 = tpu.matmul %0, %12, %cst_18 {dimension_numbers = #tpu.dot_dimension_numbers<[1], [0], [0], [1], [0, 0, 1, 1], [], []>} : vector<8x16xbf16>, vector<16x20xbf16>, vector<8x20xf32> -> vector<8x20xf32>
    %14 = tpu.concatenate %4, %7, %10, %13 in 0 : vector<8x20xf32>, vector<8x20xf32>, vector<8x20xf32>, vector<8x20xf32> -> vector<32x20xf32>
    %15 = arith.truncf %14 : vector<32x20xf32> to vector<32x20xbf16>
    %cst_19 = arith.constant dense<0.000000e+00> : vector<32x128xf32>
    %16 = tpu.matmul %15, %1, %cst_19 {dimension_numbers = #tpu.dot_dimension_numbers<[1], [0], [0], [1], [0, 0, 1, 1], [], []>} : vector<32x20xbf16>, vector<20x128xbf16>, vector<32x128xf32> -> vector<32x128xf32>
    %17 = vector.shape_cast %16 : vector<32x128xf32> to vector<4x8x128xf32>
    %c0_20 = arith.constant 0 : index
    %c0_21 = arith.constant 0 : index
    %c0_22 = arith.constant 0 : index
    %c0_23 = arith.constant 0 : index
    %18 = vector.load %arg4[%c0_20, %c0_21, %c0_22, %c0_23] : memref<1x4x8x128xf32, #tpu.memory_space<vmem>>, vector<1x4x8x128xf32>
    %19 = vector.shape_cast %18 : vector<1x4x8x128xf32> to vector<4x8x128xf32>
    %20 = vector.shape_cast %17 : vector<4x8x128xf32> to vector<1x4x8x128xf32>
    tpu.vector_store %arg4[%c0_20, %c0_21, %c0_22, %c0_23], %20 {strides = array<i32>} : memref<1x4x8x128xf32, #tpu.memory_space<vmem>>, vector<1x4x8x128xf32>,
    return
  }
  func.func @transform_0(%arg0: i32) -> (i32, i32, i32, i32) {
    %c0_i32 = arith.constant 0 : i32
    %c0_i32_0 = arith.constant 0 : i32
    %c0_i32_1 = arith.constant 0 : i32
    %c0_i32_2 = arith.constant 0 : i32
    return %arg0, %c0_i32, %c0_i32_0, %c0_i32_1 : i32, i32, i32, i32
  }
  func.func @transform_1(%arg0: i32) -> (i32, i32) {
    %c0_i32 = arith.constant 0 : i32
    %c0_i32_0 = arith.constant 0 : i32
    %c0_i32_1 = arith.constant 0 : i32
    return %c0_i32, %c0_i32_0 : i32, i32
  }
  func.func @transform_2(%arg0: i32) -> (i32, i32) {
    %c0_i32 = arith.constant 0 : i32
    %c0_i32_0 = arith.constant 0 : i32
    %c0_i32_1 = arith.constant 0 : i32
    return %c0_i32, %c0_i32_0 : i32, i32
  }
  func.func @transform_3(%arg0: i32) -> (i32, i32, i32, i32) {
    %c0_i32 = arith.constant 0 : i32
    %c0_i32_0 = arith.constant 0 : i32
    %c0_i32_1 = arith.constant 0 : i32
    %c0_i32_2 = arith.constant 0 : i32
    return %arg0, %c0_i32, %c0_i32_0, %c0_i32_1 : i32, i32, i32, i32
  }
}

</mosaic_0001>

<llo_original>
// kernel: tpu_custom_call.1
$region0: #{tpu_custom_call.1}
  #allocation0 [shape = 'u32[]', space=smem, size = 0x4, offset = 0x4, fixed_abs, tag = 'smem constant byte address 0x4 - core index']
  #allocation1 [shape = 'u32[144,128]{1,0:T(1,128)}', space=vmem, size = 0x12000, scoped, tag = 'internal scratch']
  %s0 = inlined_call_operand.hbm [shape: bf16[2,4,16,20], index: 0, kind: input, shape index: {}]
  %s1 = inlined_call_operand.hbm [shape: bf16[8,16], index: 1, kind: input, shape index: {}]
  %s2 = inlined_call_operand.hbm [shape: bf16[20,128], index: 2, kind: input, shape index: {}]
  %s3 = inlined_call_operand.hbm [shape: f32[2,4,8,128], index: 3, kind: output, shape index: {}]
  %s4 = sld [smem:[#allocation0]]
  $region57: #{tpu_custom_call.1} parent=0
    _
  %s6 = ssub.s32 1, %s4
  %s7 = scalar_select 0, %s6, %s4
  $region1: #{tpu_custom_call.1} parent=0
    #allocation2 [shape = 'u8[32768]{0}', space=vmem, size = 0x8000, scoped, tag = 'input window, operand 0']
    #allocation3 [shape = 's32[2]{0}', space=sflag, size = 0x8, scoped, tag = 'scoped memory for tpu_custom_call.1']
    #allocation4 [shape = 's32[2]{0}', space=sflag, size = 0x8, scoped, tag = 'scoped memory for tpu_custom_call.1']
    #allocation5 [shape = 'u8[2048]{0}', space=vmem, size = 0x800, scoped, tag = 'input window, operand 1, single buffered']
    #allocation6 [shape = 's32[1]{0}', space=sflag, size = 0x4, scoped, tag = 'scoped memory for tpu_custom_call.1']
    #allocation7 [shape = 'u8[6144]{0}', space=vmem, size = 0x1800, scoped, tag = 'input window, operand 2, single buffered']
    #allocation8 [shape = 'u8[32768]{0}', space=vmem, size = 0x8000, scoped, tag = 'output window, operand 0']
    %8 = vsyncpa [#allocation3], 0
    %s9 = scalar_lea.sflag [#allocation3], 1
    %10 = vsyncpa %s9, 0
    %11 = vsyncpa [#allocation6], 0
    %12 = vsyncpa [#allocation4], 0
    %s13 = scalar_lea.sflag [#allocation4], 1
    %14 = vsyncpa %s13, 0
    loop: start=0, step=1, limit=4
    $region2: #{tpu_custom_call.1} parent=1 // loop_pre_header
      _
    $region3: #{tpu_custom_call.1} parent=1 // loop_header
      %s16 = sphi 0, %s20
      %p17 = scmp.ge.s32.totalorder %s16, 4
      %s26 = sphi 0, %s28
      %s29 = sphi 0, %s26
      %s30 = sphi 0, %s29
      %s46 = sphi 0, %s30
      %s50 = sphi 0, %s50
      %s52 = sphi 0, %s50
      %s53 = sphi 0, %s52
      %s67 = sphi 0, %s53
      %s71 = sphi 0, %s71
      %s73 = sphi 0, %s71
      %s74 = sphi 0, %s73
      %s88 = sphi 0, %s74
      %s94 = sphi 0, %s96
      %s97 = sphi 0, %s94
      %s98 = sphi 0, %s97
      %s114 = sphi 0, %s98
    $region4: #{tpu_custom_call.1} parent=1 // loop_header_branch
      %19 = sbr.rel (%p17) target = $region8
    $region5: #{tpu_custom_call.1} parent=1 // loop_body
      %s21 = ssub.s32 %s16, 1
      %s22 = ssub.s32 %s16, 2
      %s23 = sadd.s32 %s16, 1
      %s24 = ssub.s32 %s16, %s23
      %p25 = scmp.eq.s32.totalorder %s24, 0
      %s27 = sadd.s32 %s26, 1
      %s28 = scalar_select %p25, %s26, %s27
      %p31 = pneg %p25
      %p32 = scmp.eq.s32.totalorder %s16, 1
      %p33 = por %p31, %p32
      %p34 = scmp.ne.s32.totalorder %s26, %s29
      %p35 = scmp.eq.s32.totalorder %s16, 0
      %p36 = por %p34, %p35
      %p37 = scmp.ne.s32.totalorder %s26, %s29
      %p38 = scmp.eq.s32.totalorder %s21, 1
      %p39 = por %p37, %p38
      %p40 = scmp.ne.s32.totalorder %s29, %s30
      %p41 = scmp.eq.s32.totalorder %s21, 0
      %p42 = por %p40, %p41
      %p43 = scmp.ne.s32.totalorder %s29, %s30
      %p44 = scmp.eq.s32.totalorder %s22, 1
      %p45 = por %p43, %p44
      %p47 = scmp.ne.s32.totalorder %s30, %s46
      %p48 = scmp.eq.s32.totalorder %s22, 0
      %p49 = por %p47, %p48
      %s51 = sadd.s32 %s50, 1
      %p54 = scmp.eq.s32.totalorder %s16, 1
      %p55 = scmp.ne.s32.totalorder %s50, %s52
      %p56 = scmp.eq.s32.totalorder %s16, 0
      %p57 = por %p55, %p56
      %p58 = scmp.ne.s32.totalorder %s50, %s52
      %p59 = scmp.eq.s32.totalorder %s21, 1
      %p60 = por %p58, %p59
      %p61 = scmp.ne.s32.totalorder %s52, %s53
      %p62 = scmp.eq.s32.totalorder %s21, 0
      %p63 = por %p61, %p62
      %p64 = scmp.ne.s32.totalorder %s52, %s53
      %p65 = scmp.eq.s32.totalorder %s22, 1
      %p66 = por %p64, %p65
      %p68 = scmp.ne.s32.totalorder %s53, %s67
      %p69 = scmp.eq.s32.totalorder %s22, 0
      %p70 = por %p68, %p69
      %s72 = sadd.s32 %s71, 1
      %p75 = scmp.eq.s32.totalorder %s16, 1
      %p76 = scmp.ne.s32.totalorder %s71, %s73
      %p77 = scmp.eq.s32.totalorder %s16, 0
      %p78 = por %p76, %p77
      %p79 = scmp.ne.s32.totalorder %s71, %s73
      %p80 = scmp.eq.s32.totalorder %s21, 1
      %p81 = por %p79, %p80
      %p82 = scmp.ne.s32.totalorder %s73, %s74
      %p83 = scmp.eq.s32.totalorder %s21, 0
      %p84 = por %p82, %p83
      %p85 = scmp.ne.s32.totalorder %s73, %s74
      %p86 = scmp.eq.s32.totalorder %s22, 1
      %p87 = por %p85, %p86
      %p89 = scmp.ne.s32.totalorder %s74, %s88
      %p90 = scmp.eq.s32.totalorder %s22, 0
      %p91 = por %p89, %p90
      %s92 = ssub.s32 %s16, %s23
      %p93 = scmp.eq.s32.totalorder %s92, 0
      %s95 = sadd.s32 %s94, 1
      %s96 = scalar_select %p93, %s94, %s95
      %p99 = pneg %p93
      %p100 = scmp.eq.s32.totalorder %s16, 1
      %p101 = por %p99, %p100
      %p102 = scmp.ne.s32.totalorder %s94, %s97
      %p103 = scmp.eq.s32.totalorder %s16, 0
      %p104 = por %p102, %p103
      %p105 = scmp.ne.s32.totalorder %s94, %s97
      %p106 = scmp.eq.s32.totalorder %s21, 1
      %p107 = por %p105, %p106
      %p108 = scmp.ne.s32.totalorder %s97, %s98
      %p109 = scmp.eq.s32.totalorder %s21, 0
      %p110 = por %p108, %p109
      %p111 = scmp.ne.s32.totalorder %s97, %s98
      %p112 = scmp.eq.s32.totalorder %s22, 1
      %p113 = por %p111, %p112
      %p115 = scmp.ne.s32.totalorder %s98, %s114
      %p116 = scmp.eq.s32.totalorder %s22, 0
      %p117 = por %p115, %p116
      %p118 = scmp.le.s32.totalorder 1, %s16
      %p119 = scmp.lt.s32.totalorder %s16, 3
      %p120 = pnand %p118, %p119
      %p121 = pneg %p120
      // Predicated region
      $region9: #{tpu_custom_call.1} parent=5 // pred_check
        _
      $region10: #{tpu_custom_call.1} parent=5 // pred_check_branch
        %123 = sbr.rel (%p120) target = $region12
      $region11: #{tpu_custom_call.1} parent=5 // pred_region
        %s124 = ssub.s32 %s16, 1
        // Predicated region
        $region13: #{tpu_custom_call.1} parent=11 // pred_check
          %p125 = pneg %p63
        $region14: #{tpu_custom_call.1} parent=11 // pred_check_branch
          %127 = sbr.rel (%p125) target = $region16
        $region15: #{tpu_custom_call.1} parent=11 // pred_region
          %s129 = ssub.s32 64, 64
          %130 = vsyncadd [#allocation6], %s129
          %s132 = sshll.u32 [#allocation5], 4
          %s133 = int_to_ptr.vmem [resolvable:$true] %s132
          %135 = dma.hbm_to_vmem [thread:$0]  %s1, 64, %s133, [#allocation6]
        $region16: #{tpu_custom_call.1} parent=11 // pred_fallthru
          _
        // Predicated region
        $region17: #{tpu_custom_call.1} parent=11 // pred_check
          %p136 = pneg %p84
        $region18: #{tpu_custom_call.1} parent=11 // pred_check_branch
          %138 = sbr.rel (%p136) target = $region20
        $region19: #{tpu_custom_call.1} parent=11 // pred_region
          %s140 = ssub.s32 192, 192
          %141 = vsyncadd [#allocation6], %s140
          %s142 = sshll.u32 [#allocation7], 4
          %s143 = int_to_ptr.vmem [resolvable:$true] %s142
          %148 = dma.hbm_to_vmem [thread:$0]  %s2, 192, %s143, [#allocation6], 64, 64, 4
        $region20: #{tpu_custom_call.1} parent=11 // pred_fallthru
          _
      $region12: #{tpu_custom_call.1} parent=5 // pred_fallthru
        _
      %p149 = scmp.lt.s32.totalorder %s16, 2
      // Predicated region
      $region21: #{tpu_custom_call.1} parent=5 // pred_check
        %p150 = pneg %p149
      $region22: #{tpu_custom_call.1} parent=5 // pred_check_branch
        %152 = sbr.rel (%p150) target = $region24
      $region23: #{tpu_custom_call.1} parent=5 // pred_region
        // Predicated region
        $region25: #{tpu_custom_call.1} parent=23 // pred_check
          %p153 = pneg %p36
        $region26: #{tpu_custom_call.1} parent=23 // pred_check_branch
          %155 = sbr.rel (%p153) target = $region28
        $region27: #{tpu_custom_call.1} parent=23 // pred_region
          %s156 = sand.u32 %s26, 1
          %s157 = scalar_lea.sflag [#allocation3], %s156
          %s158 = sand.u32 %s26, 1
          %s159 = smul.addr %s158, 32
          %s160 = scalar_lea.vmem [#allocation2], %s159
          %s162 = ssub.s32 512, 512
          %163 = vsyncadd %s157, %s162
          %s164 = smul.addr %s16, 8
          %s165 = smul.addr %s164, 64
          %s166 = scalar_lea.hbm %s0, %s165
          %s167 = sshll.u32 %s160, 4
          %s168 = int_to_ptr.vmem [resolvable:$true] %s167
          %173 = dma.hbm_to_vmem [thread:$0]  %s166, 512, %s168, %s157, 64, 64, 4
        $region28: #{tpu_custom_call.1} parent=23 // pred_fallthru
          _
      $region24: #{tpu_custom_call.1} parent=5 // pred_fallthru
        _
      %p174 = scmp.le.s32.totalorder 1, %s16
      %p175 = scmp.lt.s32.totalorder %s16, 3
      %p176 = pnand %p174, %p175
      %p177 = pneg %p176
      // Predicated region
      $region29: #{tpu_custom_call.1} parent=5 // pred_check
        _
      $region30: #{tpu_custom_call.1} parent=5 // pred_check_branch
        %179 = sbr.rel (%p176) target = $region32
      $region31: #{tpu_custom_call.1} parent=5 // pred_region
        %s180 = ssub.s32 %s16, 1
        %s181 = sand.u32 %s29, 1
        %s182 = scalar_lea.sflag [#allocation3], %s181
        %s183 = sand.u32 %s29, 1
        %s184 = smul.addr %s183, 32
        %s185 = scalar_lea.vmem [#allocation2], %s184
        // Predicated region
        $region33: #{tpu_custom_call.1} parent=31 // pred_check
          %p186 = pneg %p42
        $region34: #{tpu_custom_call.1} parent=31 // pred_check_branch
          %188 = sbr.rel (%p186) target = $region36
        $region35: #{tpu_custom_call.1} parent=31 // pred_region
          %189 = dma.done %s182, 512
        $region36: #{tpu_custom_call.1} parent=31 // pred_fallthru
          _
        // Predicated region
        $region37: #{tpu_custom_call.1} parent=31 // pred_check
          %p190 = pneg %p63
        $region38: #{tpu_custom_call.1} parent=31 // pred_check_branch
          %192 = sbr.rel (%p190) target = $region40
        $region39: #{tpu_custom_call.1} parent=31 // pred_region
          %193 = dma.done [#allocation6], 64
        $region40: #{tpu_custom_call.1} parent=31 // pred_fallthru
          _
        // Predicated region
        $region41: #{tpu_custom_call.1} parent=31 // pred_check
          %p194 = pneg %p84
        $region42: #{tpu_custom_call.1} parent=31 // pred_check_branch
          %196 = sbr.rel (%p194) target = $region44
        $region43: #{tpu_custom_call.1} parent=31 // pred_region
          %197 = dma.done [#allocation6], 192
        $region44: #{tpu_custom_call.1} parent=31 // pred_fallthru
          _
        %s198 = sand.u32 %s29, 1
        %s199 = scalar_lea.sflag [#allocation3], %s198
        %s200 = sand.u32 %s29, 1
        %s201 = smul.addr %s200, 32
        %s202 = scalar_lea.vmem [#allocation2], %s201
        %p203 = pneg %p42
        %p204 = pneg %p39
        %p205 = pneg %p63
        %p206 = pneg %p60
        %p207 = pneg %p84
        %p208 = pneg %p81
        %p209 = pneg %p110
        %p210 = pneg %p107
        %s211 = sand.u32 %s97, 1
        %s212 = scalar_lea.sflag [#allocation4], %s211
        %s213 = sand.u32 %s97, 1
        %s214 = smul.addr %s213, 32
        %s215 = scalar_lea.vmem [#allocation8], %s214
        %v217 = vld [vmem:[#allocation5] sm:$0xf]
        %v218 = vld [vmem:[#allocation7] sm:$0xf]
        %v219 = vld [vmem:[#allocation7 + $0x4] sm:$0xf]
        %v220 = vld [vmem:[#allocation7 + $0x8] sm:$0x3]
        %v221 = vld [vmem:[%s185] sm:$0xf]
        %v222 = vld [vmem:[%s185 + $0x4] sm:$0xf]
        %v225 = vunpack.c.l.b16 %v221
        %v226 = vunpack.c.l.b16 %v222
        %v227 = vpack.c.b16 %v226, %v225
        %vm229 = vcmask 130048
        %v231 = vsel %vm229, %v217, 0
        %233 = vmatprep.subr.bf16.mxu0 0
        %234 = vmatpush1.bf16.msra.mxu0 %v227
        %235 = vmatprep.subr.bf16.mxu0 0
        %236 = vmatpush1.bf16.msra.mxu0 0
        %237 = vmatprep.subr.bf16.mxu0 0
        %238 = vmatpush1.bf16.msra.mxu0 0
        %239 = vmatprep.subr.bf16.mxu0 0
        %240 = vmatpush1.bf16.msra.mxu0 0
        %241 = vmatprep.subr.bf16.mxu0 0
        %242 = vmatpush1.bf16.msra.mxu0 0
        %243 = vmatprep.subr.bf16.mxu0 0
        %244 = vmatpush1.bf16.msra.mxu0 0
        %245 = vmatprep.subr.bf16.mxu0 0
        %246 = vmatpush1.bf16.msra.mxu0 0
        %247 = vmatprep.subr.bf16.mxu0 0
        %248 = vmatpush1.bf16.msra.mxu0 0
        %249 = vmatprep.subr.bf16.mxu0 0
        %250 = vmatpush1.bf16.msra.mxu0 0
        %251 = vmatprep.subr.bf16.mxu0 0
        %252 = vmatpush1.bf16.msra.mxu0 0
        %253 = vmatprep.subr.bf16.mxu0 0
        %254 = vmatpush1.bf16.msra.mxu0 0
        %255 = vmatprep.subr.bf16.mxu0 0
        %256 = vmatpush1.bf16.msra.mxu0 0
        %257 = vmatprep.subr.bf16.mxu0 0
        %258 = vmatpush1.bf16.msra.mxu0 0
        %259 = vmatprep.subr.bf16.mxu0 0
        %260 = vmatpush1.bf16.msra.mxu0 0
        %261 = vmatprep.subr.bf16.mxu0 0
        %262 = vmatpush1.bf16.msra.mxu0 0
        %263 = vmatprep.subr.bf16.mxu0 0
        %264 = vmatpush1.bf16.msra.mxu0 0
        %265 = vmatprep.mubr.bf16.mxu0 0
        %266 = vmatmul.mubr.bf16.gmra.mrb[0].mxu0 %v231
        %v267 = vpop.f32.mrb[0].mxu0
        %v268 = vadd.f32 0.0, %v267
        %v269 = vpop.f32.mrb[0].mxu0
        %v270 = vpop.f32.mrb[0].mxu0
        %v271 = vpop.f32.mrb[0].mxu0
        %272 = vdwg.mxu0
        %s273 = scalar_lea.vmem %s185, 8 [#allocation2]
        %v274 = vld [vmem:[%s273] sm:$0xf]
        %v275 = vld [vmem:[%s273 + $0x4] sm:$0xf]
        %v278 = vunpack.c.l.b16 %v274
        %v279 = vunpack.c.l.b16 %v275
        %v280 = vpack.c.b16 %v279, %v278
        %282 = vmatprep.subr.bf16.mxu0 0
        %283 = vmatpush1.bf16.msra.mxu0 %v280
        %284 = vmatprep.subr.bf16.mxu0 0
        %285 = vmatpush1.bf16.msra.mxu0 0
        %286 = vmatprep.subr.bf16.mxu0 0
        %287 = vmatpush1.bf16.msra.mxu0 0
        %288 = vmatprep.subr.bf16.mxu0 0
        %289 = vmatpush1.bf16.msra.mxu0 0
        %290 = vmatprep.subr.bf16.mxu0 0
        %291 = vmatpush1.bf16.msra.mxu0 0
        %292 = vmatprep.subr.bf16.mxu0 0
        %293 = vmatpush1.bf16.msra.mxu0 0
        %294 = vmatprep.subr.bf16.mxu0 0
        %295 = vmatpush1.bf16.msra.mxu0 0
        %296 = vmatprep.subr.bf16.mxu0 0
        %297 = vmatpush1.bf16.msra.mxu0 0
        %298 = vmatprep.subr.bf16.mxu0 0
        %299 = vmatpush1.bf16.msra.mxu0 0
        %300 = vmatprep.subr.bf16.mxu0 0
        %301 = vmatpush1.bf16.msra.mxu0 0
        %302 = vmatprep.subr.bf16.mxu0 0
        %303 = vmatpush1.bf16.msra.mxu0 0
        %304 = vmatprep.subr.bf16.mxu0 0
        %305 = vmatpush1.bf16.msra.mxu0 0
        %306 = vmatprep.subr.bf16.mxu0 0
        %307 = vmatpush1.bf16.msra.mxu0 0
        %308 = vmatprep.subr.bf16.mxu0 0
        %309 = vmatpush1.bf16.msra.mxu0 0
        %310 = vmatprep.subr.bf16.mxu0 0
        %311 = vmatpush1.bf16.msra.mxu0 0
        %312 = vmatprep.subr.bf16.mxu0 0
        %313 = vmatpush1.bf16.msra.mxu0 0
        %314 = vmatprep.mubr.bf16.mxu0 0
        %315 = vmatmul.mubr.bf16.gmra.mrb[0].mxu0 %v231
        %v316 = vpop.f32.mrb[0].mxu0
        %v317 = vadd.f32 0.0, %v316
        %v318 = vpop.f32.mrb[0].mxu0
        %v319 = vpop.f32.mrb[0].mxu0
        %v320 = vpop.f32.mrb[0].mxu0
        %321 = vdwg.mxu0
        %s322 = scalar_lea.vmem %s185, 16 [#allocation2]
        %v323 = vld [vmem:[%s322] sm:$0xf]
        %v324 = vld [vmem:[%s322 + $0x4] sm:$0xf]
        %v327 = vunpack.c.l.b16 %v323
        %v328 = vunpack.c.l.b16 %v324
        %v329 = vpack.c.b16 %v328, %v327
        %331 = vmatprep.subr.bf16.mxu0 0
        %332 = vmatpush1.bf16.msra.mxu0 %v329
        %333 = vmatprep.subr.bf16.mxu0 0
        %334 = vmatpush1.bf16.msra.mxu0 0
        %335 = vmatprep.subr.bf16.mxu0 0
        %336 = vmatpush1.bf16.msra.mxu0 0
        %337 = vmatprep.subr.bf16.mxu0 0
        %338 = vmatpush1.bf16.msra.mxu0 0
        %339 = vmatprep.subr.bf16.mxu0 0
        %340 = vmatpush1.bf16.msra.mxu0 0
        %341 = vmatprep.subr.bf16.mxu0 0
        %342 = vmatpush1.bf16.msra.mxu0 0
        %343 = vmatprep.subr.bf16.mxu0 0
        %344 = vmatpush1.bf16.msra.mxu0 0
        %345 = vmatprep.subr.bf16.mxu0 0
        %346 = vmatpush1.bf16.msra.mxu0 0
        %347 = vmatprep.subr.bf16.mxu0 0
        %348 = vmatpush1.bf16.msra.mxu0 0
        %349 = vmatprep.subr.bf16.mxu0 0
        %350 = vmatpush1.bf16.msra.mxu0 0
        %351 = vmatprep.subr.bf16.mxu0 0
        %352 = vmatpush1.bf16.msra.mxu0 0
        %353 = vmatprep.subr.bf16.mxu0 0
        %354 = vmatpush1.bf16.msra.mxu0 0
        %355 = vmatprep.subr.bf16.mxu0 0
        %356 = vmatpush1.bf16.msra.mxu0 0
        %357 = vmatprep.subr.bf16.mxu0 0
        %358 = vmatpush1.bf16.msra.mxu0 0
        %359 = vmatprep.subr.bf16.mxu0 0
        %360 = vmatpush1.bf16.msra.mxu0 0
        %361 = vmatprep.subr.bf16.mxu0 0
        %362 = vmatpush1.bf16.msra.mxu0 0
        %363 = vmatprep.mubr.bf16.mxu0 0
        %364 = vmatmul.mubr.bf16.gmra.mrb[0].mxu0 %v231
        %v365 = vpop.f32.mrb[0].mxu0
        %v366 = vadd.f32 0.0, %v365
        %v367 = vpop.f32.mrb[0].mxu0
        %v368 = vpop.f32.mrb[0].mxu0
        %v369 = vpop.f32.mrb[0].mxu0
        %370 = vdwg.mxu0
        %s371 = scalar_lea.vmem %s185, 24 [#allocation2]
        %v372 = vld [vmem:[%s371] sm:$0xf]
        %v373 = vld [vmem:[%s371 + $0x4] sm:$0xf]
        %v376 = vunpack.c.l.b16 %v372
        %v377 = vunpack.c.l.b16 %v373
        %v378 = vpack.c.b16 %v377, %v376
        %380 = vmatprep.subr.bf16.mxu0 0
        %381 = vmatpush1.bf16.msra.mxu0 %v378
        %382 = vmatprep.subr.bf16.mxu0 0
        %383 = vmatpush1.bf16.msra.mxu0 0
        %384 = vmatprep.subr.bf16.mxu0 0
        %385 = vmatpush1.bf16.msra.mxu0 0
        %386 = vmatprep.subr.bf16.mxu0 0
        %387 = vmatpush1.bf16.msra.mxu0 0
        %388 = vmatprep.subr.bf16.mxu0 0
        %389 = vmatpush1.bf16.msra.mxu0 0
        %390 = vmatprep.subr.bf16.mxu0 0
        %391 = vmatpush1.bf16.msra.mxu0 0
        %392 = vmatprep.subr.bf16.mxu0 0
        %393 = vmatpush1.bf16.msra.mxu0 0
        %394 = vmatprep.subr.bf16.mxu0 0
        %395 = vmatpush1.bf16.msra.mxu0 0
        %396 = vmatprep.subr.bf16.mxu0 0
        %397 = vmatpush1.bf16.msra.mxu0 0
        %398 = vmatprep.subr.bf16.mxu0 0
        %399 = vmatpush1.bf16.msra.mxu0 0
        %400 = vmatprep.subr.bf16.mxu0 0
        %401 = vmatpush1.bf16.msra.mxu0 0
        %402 = vmatprep.subr.bf16.mxu0 0
        %403 = vmatpush1.bf16.msra.mxu0 0
        %404 = vmatprep.subr.bf16.mxu0 0
        %405 = vmatpush1.bf16.msra.mxu0 0
        %406 = vmatprep.subr.bf16.mxu0 0
        %407 = vmatpush1.bf16.msra.mxu0 0
        %408 = vmatprep.subr.bf16.mxu0 0
        %409 = vmatpush1.bf16.msra.mxu0 0
        %410 = vmatprep.subr.bf16.mxu0 0
        %411 = vmatpush1.bf16.msra.mxu0 0
        %412 = vmatprep.mubr.bf16.mxu0 0
        %413 = vmatmul.mubr.bf16.gmra.mrb[0].mxu0 %v231
        %v414 = vpop.f32.mrb[0].mxu0
        %v415 = vadd.f32 0.0, %v414
        %v416 = vpop.f32.mrb[0].mxu0
        %v417 = vpop.f32.mrb[0].mxu0
        %v418 = vpop.f32.mrb[0].mxu0
        %419 = vdwg.mxu0
        %v420 = vpack.c.bf16 %v317, %v268
        %v421 = vpack.c.bf16 %v415, %v366
        %v425 = vunpack.c.l.b16 %v218
        %v426 = vunpack.c.l.b16 %v219
        %v427 = vunpack.c.l.b16 %v220
        %v428 = vpack.c.b16 %v426, %v425
        %v429 = vpack.c.b16 %v427, %v427
        %vm431 = vcmask 162816
        %v433 = vsel %vm431, %v420, 0
        %v436 = vsel %vm431, %v421, 0
        %vm438 = vcmask 1041408
        %v440 = vsel %vm438, %v429, 0
        %442 = vmatprep.subr.bf16.mxu0 0
        %443 = vmatpush1.bf16.msra.mxu0 %v428
        %444 = vmatprep.subr.bf16.mxu0 0
        %445 = vmatpush1.bf16.msra.mxu0 %v440
        %446 = vmatprep.subr.bf16.mxu0 0
        %447 = vmatpush1.bf16.msra.mxu0 0
        %448 = vmatprep.subr.bf16.mxu0 0
        %449 = vmatpush1.bf16.msra.mxu0 0
        %450 = vmatprep.subr.bf16.mxu0 0
        %451 = vmatpush1.bf16.msra.mxu0 0
        %452 = vmatprep.subr.bf16.mxu0 0
        %453 = vmatpush1.bf16.msra.mxu0 0
        %454 = vmatprep.subr.bf16.mxu0 0
        %455 = vmatpush1.bf16.msra.mxu0 0
        %456 = vmatprep.subr.bf16.mxu0 0
        %457 = vmatpush1.bf16.msra.mxu0 0
        %458 = vmatprep.subr.bf16.mxu0 0
        %459 = vmatpush1.bf16.msra.mxu0 0
        %460 = vmatprep.subr.bf16.mxu0 0
        %461 = vmatpush1.bf16.msra.mxu0 0
        %462 = vmatprep.subr.bf16.mxu0 0
        %463 = vmatpush1.bf16.msra.mxu0 0
        %464 = vmatprep.subr.bf16.mxu0 0
        %465 = vmatpush1.bf16.msra.mxu0 0
        %466 = vmatprep.subr.bf16.mxu0 0
        %467 = vmatpush1.bf16.msra.mxu0 0
        %468 = vmatprep.subr.bf16.mxu0 0
        %469 = vmatpush1.bf16.msra.mxu0 0
        %470 = vmatprep.subr.bf16.mxu0 0
        %471 = vmatpush1.bf16.msra.mxu0 0
        %472 = vmatprep.subr.bf16.mxu0 0
        %473 = vmatpush1.bf16.msra.mxu0 0
        %474 = vmatprep.mubr.bf16.mxu0 0
        %475 = vmatmul.mubr.bf16.gmra.mrb[0].mxu0 %v433
        %v476 = vpop.f32.mrb[0].mxu0
        %v477 = vadd.f32 0.0, %v476
        %v478 = vpop.f32.mrb[0].mxu0
        %v479 = vpop.f32.mrb[0].mxu0
        %v480 = vadd.f32 0.0, %v479
        %v481 = vpop.f32.mrb[0].mxu0
        %482 = vmatprep.mubr.bf16.mxu0 0
        %483 = vmatmul.mubr.bf16.gmra.mrb[0].mxu0 %v436
        %v484 = vpop.f32.mrb[0].mxu0
        %v485 = vadd.f32 0.0, %v484
        %v486 = vpop.f32.mrb[0].mxu0
        %v487 = vpop.f32.mrb[0].mxu0
        %v488 = vadd.f32 0.0, %v487
        %v489 = vpop.f32.mrb[0].mxu0
        %490 = vdwg.mxu0
        %491 = vst [vmem:[%s215] sm:$0xff] %v477
        %492 = vst [vmem:[%s215 + $0x8] sm:$0xff] %v480
        %493 = vst [vmem:[%s215 + $0x10] sm:$0xff] %v485
        %494 = vst [vmem:[%s215 + $0x18] sm:$0xff] %v488
        %s495 = sand.u32 %s97, 1
        %s496 = scalar_lea.sflag [#allocation4], %s495
        %s497 = sand.u32 %s97, 1
        %s498 = smul.addr %s497, 32
        %s499 = scalar_lea.vmem [#allocation8], %s498
        // Predicated region
        $region45: #{tpu_custom_call.1} parent=31 // pred_check
          %p500 = pneg %p107
        $region46: #{tpu_custom_call.1} parent=31 // pred_check_branch
          %502 = sbr.rel (%p500) target = $region48
        $region47: #{tpu_custom_call.1} parent=31 // pred_region
          %s504 = ssub.s32 512, 512
          %505 = vsyncadd %s496, %s504
          %s506 = smul.addr %s21, 4
          %s507 = smul.addr %s506, 128
          %s508 = scalar_lea.hbm %s3, %s507
          %s509 = sshll.u32 %s499, 4
          %s510 = int_to_ptr.vmem [resolvable:$true] %s509
          %515 = dma.vmem_to_hbm [thread:$0]  %s510, 512, %s508, %s496, 128, 128, 8
        $region48: #{tpu_custom_call.1} parent=31 // pred_fallthru
          _
      $region32: #{tpu_custom_call.1} parent=5 // pred_fallthru
        _
      %p516 = scmp.le.s32.totalorder 2, %s16
      // Predicated region
      $region49: #{tpu_custom_call.1} parent=5 // pred_check
        %p517 = pneg %p516
      $region50: #{tpu_custom_call.1} parent=5 // pred_check_branch
        %519 = sbr.rel (%p517) target = $region52
      $region51: #{tpu_custom_call.1} parent=5 // pred_region
        %s520 = ssub.s32 %s16, 2
        // Predicated region
        $region53: #{tpu_custom_call.1} parent=51 // pred_check
          %p521 = pneg %p113
        $region54: #{tpu_custom_call.1} parent=51 // pred_check_branch
          %523 = sbr.rel (%p521) target = $region56
        $region55: #{tpu_custom_call.1} parent=51 // pred_region
          %s524 = sand.u32 %s98, 1
          %s525 = scalar_lea.sflag [#allocation4], %s524
          %s526 = sand.u32 %s98, 1
          %s527 = smul.addr %s526, 32
          %s528 = scalar_lea.vmem [#allocation8], %s527
          %529 = dma.done %s525, 512
        $region56: #{tpu_custom_call.1} parent=51 // pred_fallthru
          _
      $region52: #{tpu_custom_call.1} parent=5 // pred_fallthru
        _
    $region6: #{tpu_custom_call.1} parent=1 // loop_footer
      %s20 = sadd.s32 1, %s16
    $region7: #{tpu_custom_call.1} parent=1 // loop_footer_branch
      %15 = sbr.rel target = $region3
    $region8: #{tpu_custom_call.1} parent=1 // loop_exit
      _
    %530 = vsyncpa [#allocation3], 1
    %s531 = scalar_lea.sflag [#allocation3], 1
    %532 = vsyncpa %s531, 1
    %533 = vsyncpa [#allocation6], 1
    %534 = vsyncpa [#allocation4], 1
    %s535 = scalar_lea.sflag [#allocation4], 1
    %536 = vsyncpa %s535, 1

</llo_original>
